<compile_context>
chip_gen: v5e
topology: v5e:2x2
jax: 0.10.0
libtpu: 0.0.40
codegen_flags: <defaults>
</compile_context>

<pallas_src>
import functools
import inspect

import jax
import jax.numpy as jnp
from jax.experimental import pallas as pl
from jax.experimental.pallas import tpu as pltpu


def _round_up(x, m):
    return ((x + m - 1) // m) * m


def _next_pow2(n):
    n = int(n)
    if n <= 1:
        return 1
    return 1 << (n - 1).bit_length()


def _vmem_capacity_bytes():
    # Physical VMEM of the attached chip (128 MiB on v5e/v6e, 64 MiB on v7x).
    try:
        cap = int(getattr(pltpu.get_tpu_info(), "vmem_capacity_bytes", 0))
        if cap > 0:
            return cap
    except Exception:
        pass
    return 64 << 20  # conservative fallback


def _const_spec_kwargs():
    # Constant-index weight blocks do not need double buffering; request a
    # single buffer when the installed Pallas exposes pipeline_mode.
    try:
        if hasattr(pl, "Buffered") and (
                "pipeline_mode" in inspect.signature(pl.BlockSpec).parameters):
            return {"pipeline_mode": pl.Buffered(1)}
    except Exception:
        pass
    return {}


def _wavenet_kernel(xh_ref, xc_ref, wconv_ref, bconv_ref, wrs_ref, brs_ref,
                    res_ref, skip_ref, col_ref,
                    *, Tt, C, Cp, S, K, dil, pad, hp, bf16_act):
    # xh_ref:   (1, hp, C)    f32  hp-aligned block ending at this tile's start
    #                              (causal halo; zero-substituted on tile 0)
    # xc_ref:   (1, Tt, C)    f32  current time tile
    # wconv_ref:(K*C, 2*Cp)   bf16 fused dilated-conv weights [data | gate]
    # bconv_ref:(1, 2*Cp)     f32
    # wrs_ref:  (Cp, Cp+Srp)  bf16 fused 1x1 weights [res | skip]
    # brs_ref:  (1, Cp+Srp)   f32
    # res_ref:  (1, Tt, C)    f32  residual-stream output
    # skip_ref: (1, Tt, S)         skip output
    # col_ref:  (Tt, K*C)     bf16 scratch: im2col slab
    t = pl.program_id(1)

    cur = xc_ref[0]                        # (Tt, C) f32, kept for exact residual
    cur_b = cur.astype(jnp.bfloat16)       # cast once, reused for all K taps

    # --- im2col straight into bf16 scratch ----------------------------------
    # Tap j of output row tt reads input time (tile_start + tt - off_j) with
    # off_j = pad - j*dil >= 0: first off_j rows come from the halo tail, the
    # rest from the current tile head.
    if pad > 0:
        @pl.when(t == 0)
        def _zero_halo():                  # causal left zero padding (cold path)
            for j in range(K):
                off = pad - j * dil
                if off > 0:
                    col_ref[0:off, j * C:(j + 1) * C] = jnp.zeros(
                        (off, C), col_ref.dtype)

        @pl.when(t > 0)
        def _copy_halo():
            xh = xh_ref[0]                 # (hp, C) f32
            for j in range(K):
                off = pad - j * dil
                if off > 0:
                    col_ref[0:off, j * C:(j + 1) * C] = (
                        xh[hp - off:hp, :].astype(col_ref.dtype))

    for j in range(K):
        off = pad - j * dil
        if off > 0:
            col_ref[off:Tt, j * C:(j + 1) * C] = cur_b[0:Tt - off, :]
        else:
            col_ref[:, j * C:(j + 1) * C] = cur_b

    # --- fused dilated conv: one (Tt,K*C)@(K*C,2*Cp) bf16 MXU matmul, f32 acc
    y = jnp.dot(col_ref[...], wconv_ref[...],
                preferred_element_type=jnp.float32) + bconv_ref[...]

    # --- gated activation; data/gate split at the 128-lane boundary Cp ------
    # (padded columns: zero weights/bias -> tanh(0)*sigmoid(0)=0, and their
    #  wrs rows are zero anyway)
    if bf16_act:                           # bf16 EUP on v6e/v7x
        yb = y.astype(jnp.bfloat16)
        h = jnp.tanh(yb[:, :Cp]) * jax.nn.sigmoid(yb[:, Cp:])
    else:                                  # v5e: keep transcendentals in f32
        h = (jnp.tanh(y[:, :Cp]) * jax.nn.sigmoid(y[:, Cp:])).astype(jnp.bfloat16)

    # --- fused res|skip 1x1 convs: one (Tt,Cp)@(Cp,Cp+Srp) matmul ------------
    fused = jnp.dot(h, wrs_ref[...],
                    preferred_element_type=jnp.float32) + brs_ref[...]

    res_ref[0] = (fused[:, :C] + cur).astype(res_ref.dtype)   # exact f32 residual
    skip_ref[0] = fused[:, Cp:Cp + S].astype(skip_ref.dtype)


def wavenet_blk_pallas_ntc(x_ntc, w_conv, b_conv, w_res, b_res, w_skip, b_skip,
                           *, dilation, t_tile=1024, bf16_act=True,
                           skip_dtype=jnp.float32):
    """NTC-native WaveNet block.
    x_ntc: (B, T, C) float32.  Weights in PyTorch Conv1d layout:
      w_conv (2C, C, K), b_conv (2C,), w_res (C, C, 1), w_skip (S, C, 1).
    Returns (res_ntc (B, T, C) f32, skip_ntc (B, T, S) skip_dtype)."""
    x_ntc = x_ntc.astype(jnp.float32)
    B, T, C = x_ntc.shape
    twoC, _, K = w_conv.shape
    assert twoC == 2 * C
    S = w_skip.shape[0]
    dil = int(dilation)
    pad = dil * (K - 1)

    Cp = _round_up(C, 128)        # per-half conv output width (lane aligned)
    Srp = _round_up(S, 128)       # skip slot width in the fused 1x1 matmul
    Wo = Cp + Srp                 # fused res|skip matmul output width

    # --- time tiling: hp = pow2 halo block covering the causal field --------
    hp = max(8, _next_pow2(pad)) if pad > 0 else 8
    t_req = min(max(int(t_tile), 1), max(T, 1))
    align = 256 if (t_req >= 256 and hp < 256) else hp   # full-rate MXU M dim
    Tt = max(align, _round_up(t_req, align))
    nT = pl.cdiv(T, Tt)           # ragged tail handled by Pallas partial blocks
    r = Tt // hp
    # TODO(synk): on v7x, bias Tt so B*nT is even (keep both TensorCores busy).

    # --- one-time weight re-layout (tiny, host-side JAX) --------------------
    f32, bf16 = jnp.float32, jnp.bfloat16
    wk = jnp.transpose(w_conv, (2, 1, 0)).reshape(K * C, 2 * C)   # [j*C+i, o]
    wconv_f = jnp.zeros((K * C, 2 * Cp), f32)
    wconv_f = wconv_f.at[:, :C].set(wk[:, :C])                    # data half
    wconv_f = wconv_f.at[:, Cp:Cp + C].set(wk[:, C:])             # gate half
    bconv_f = jnp.zeros((1, 2 * Cp), f32)
    bconv_f = bconv_f.at[0, :C].set(b_conv[:C])
    bconv_f = bconv_f.at[0, Cp:Cp + C].set(b_conv[C:])

    wrs_f = jnp.zeros((Cp, Wo), f32)
    wrs_f = wrs_f.at[:C, :C].set(jnp.transpose(w_res[:, :, 0]))
    wrs_f = wrs_f.at[:C, Cp:Cp + S].set(jnp.transpose(w_skip[:, :, 0]))
    brs_f = jnp.zeros((1, Wo), f32)
    brs_f = brs_f.at[0, :C].set(b_res)
    brs_f = brs_f.at[0, Cp:Cp + S].set(b_skip)

    wconv_bf = wconv_f.astype(bf16)
    wrs_bf = wrs_f.astype(bf16)

    # --- VMEM budget from the per-tile working set, capped by chip capacity -
    const_kwargs = _const_spec_kwargs()
    wbufs = 1 if const_kwargs else 2
    skip_bytes = jnp.dtype(skip_dtype).itemsize
    vmem_est = (
        2 * (hp + Tt) * C * 4                          # double-buffered inputs
        + 2 * Tt * (C * 4 + S * skip_bytes)            # double-buffered outputs
        + wbufs * (K * C * 2 * Cp * 2 + Cp * Wo * 2 + (2 * Cp + Wo) * 4)
        + Tt * K * C * 2                               # im2col scratch (bf16)
        + Tt * (2 * Cp * 4 + Cp * 2 + Wo * 4 + C * 6)) # live temporaries
    vmem_limit = int(min(max(2 * vmem_est + (4 << 20), 32 << 20),
                         int(_vmem_capacity_bytes() * 0.9)))

    kernel = functools.partial(_wavenet_kernel, Tt=Tt, C=C, Cp=Cp, S=S, K=K,
                               dil=dil, pad=pad, hp=hp, bf16_act=bf16_act)

    res, skip = pl.pallas_call(
        kernel,
        out_shape=(jax.ShapeDtypeStruct((B, T, C), jnp.float32),
                   jax.ShapeDtypeStruct((B, T, S), skip_dtype)),
        grid_spec=pltpu.PrefetchScalarGridSpec(
            num_scalar_prefetch=0,
            grid=(B, nT),
            in_specs=[
                # causal halo: the hp block ending exactly at this tile's start
                # (block index t*r - 1, clamped; zero-substituted when t == 0).
                pl.BlockSpec((1, hp, C),
                             lambda b, t: (b, jnp.maximum(t * r - 1, 0), 0)),
                # current time tile.
                pl.BlockSpec((1, Tt, C), lambda b, t: (b, t, 0)),
                # constants (single-buffered where supported).
                pl.BlockSpec((K * C, 2 * Cp), lambda b, t: (0, 0), **const_kwargs),
                pl.BlockSpec((1, 2 * Cp), lambda b, t: (0, 0), **const_kwargs),
                pl.BlockSpec((Cp, Wo), lambda b, t: (0, 0), **const_kwargs),
                pl.BlockSpec((1, Wo), lambda b, t: (0, 0), **const_kwargs),
            ],
            out_specs=[
                pl.BlockSpec((1, Tt, C), lambda b, t: (b, t, 0)),
                pl.BlockSpec((1, Tt, S), lambda b, t: (b, t, 0)),
            ],
            scratch_shapes=[
                pltpu.VMEM((Tt, K * C), jnp.bfloat16),   # im2col scratch
            ],
        ),
        compiler_params=pltpu.CompilerParams(
            dimension_semantics=("parallel", "parallel"),
            vmem_limit_bytes=vmem_limit),
    )(x_ntc, x_ntc, wconv_bf, bconv_f, wrs_bf, brs_f)
    return res, skip


def wavenet_blk_pallas(x_nct, w_conv, b_conv, w_res, b_res, w_skip, b_skip,
                       *, dilation, t_tile=1024, bf16_act=True,
                       skip_dtype=jnp.float32):
    """Module-interface wrapper: NCT in / NCT out (matches the PyTorch block).
    For stacked WaveNet blocks, call wavenet_blk_pallas_ntc directly and keep
    the NTC layout end-to-end so no per-block transposes are needed."""
    x_ntc = jnp.transpose(x_nct, (0, 2, 1))
    res_ntc, skip_ntc = wavenet_blk_pallas_ntc(
        x_ntc, w_conv, b_conv, w_res, b_res, w_skip, b_skip,
        dilation=dilation, t_tile=t_tile, bf16_act=bf16_act,
        skip_dtype=skip_dtype)
    return (jnp.transpose(res_ntc, (0, 2, 1)),
            jnp.transpose(skip_ntc, (0, 2, 1)))


def wavenet_blk_reference(x, w_conv, b_conv, w_res, b_res, w_skip, b_skip,
                          *, dilation):
    """Pure-JAX f32 reference mirroring the PyTorch forward (NCT layout)."""
    B, C, T = x.shape
    K = w_conv.shape[-1]
    pad = dilation * (K - 1)
    xp = jnp.pad(x, ((0, 0), (0, 0), (pad, 0)))
    y = jnp.zeros((B, 2 * C, T), jnp.float32)
    for j in range(K):
        y = y + jnp.einsum('oi,bit->bot', w_conv[:, :, j],
                           xp[:, :, j * dilation: j * dilation + T])
    y = y + b_conv[None, :, None]
    data, gate = y[:, :C], y[:, C:]
    h = jnp.tanh(data) * jax.nn.sigmoid(gate)
    skip = jnp.einsum('oi,bit->bot', w_skip[:, :, 0], h) + b_skip[None, :, None]
    res = jnp.einsum('oi,bit->bot', w_res[:, :, 0], h) + b_res[None, :, None] + x
    return res, skip


if __name__ == "__main__":
    # WaveNetBlk(res_features=4, skip_features=8, kernel_size=3, dilation=2),
    # input (B=2, C=4, T=16).
    B, C, S, K, DIL, T = 2, 4, 8, 3, 2, 16

    key = jax.random.PRNGKey(0)
    ks = jax.random.split(key, 7)
    x = jax.random.normal(ks[0], (B, C, T), jnp.float32)

    # Deterministic synthetic params (init_weights 'normal': std=0.02).
    w_conv = 0.02 * jax.random.normal(ks[1], (2 * C, C, K), jnp.float32)
    b_conv = 0.02 * jax.random.normal(ks[2], (2 * C,), jnp.float32)
    w_res = 0.02 * jax.random.normal(ks[3], (C, C, 1), jnp.float32)
    b_res = 0.02 * jax.random.normal(ks[4], (C,), jnp.float32)
    w_skip = 0.02 * jax.random.normal(ks[5], (S, C, 1), jnp.float32)
    b_skip = 0.02 * jax.random.normal(ks[6], (S,), jnp.float32)

    res_ref, skip_ref = wavenet_blk_reference(
        x, w_conv, b_conv, w_res, b_res, w_skip, b_skip, dilation=DIL)

    # Multi-tile path: T split into two time tiles -> exercises the halo fetch
    # and the in-kernel causal zero-padding on the first tile.
    res_out, skip_out = wavenet_blk_pallas(
        x, w_conv, b_conv, w_res, b_res, w_skip, b_skip,
        dilation=DIL, t_tile=8)
    jax.block_until_ready((res_out, skip_out))
    assert res_out.shape == (B, C, T) and skip_out.shape == (B, S, T)
    # bf16 matmul inputs and bf16 gated activation (f32 accumulation).
    assert jnp.allclose(res_out, res_ref, rtol=1e-2, atol=1e-2)
    assert jnp.allclose(skip_out, skip_ref, rtol=1e-2, atol=1e-2)

    # Single-tile path (whole sequence in one time tile, default t_tile).
    res_out1, skip_out1 = wavenet_blk_pallas(
        x, w_conv, b_conv, w_res, b_res, w_skip, b_skip, dilation=DIL)
    jax.block_until_ready((res_out1, skip_out1))
    assert jnp.allclose(res_out1, res_ref, rtol=1e-2, atol=1e-2)
    assert jnp.allclose(skip_out1, skip_ref, rtol=1e-2, atol=1e-2)

    print("KERNEL_OK")
</pallas_src>

<mosaic_0001>
module attributes {stable_mosaic.version = 11 : i64} {
  func.func @_wavenet_kernel(%arg0: i32, %arg1: i32, %arg2: memref<1x8x4xf32, #tpu.memory_space<vmem>>, %arg3: memref<1x8x4xf32, #tpu.memory_space<vmem>>, %arg4: memref<12x256xbf16, #tpu.memory_space<vmem>>, %arg5: memref<1x256xf32, #tpu.memory_space<vmem>>, %arg6: memref<128x256xbf16, #tpu.memory_space<vmem>>, %arg7: memref<1x256xf32, #tpu.memory_space<vmem>>, %arg8: memref<1x8x4xf32, #tpu.memory_space<vmem>>, %arg9: memref<1x8x8xf32, #tpu.memory_space<vmem>>, %arg10: memref<8x12xbf16, #tpu.memory_space<vmem>>) attributes {dimension_semantics = [#tpu.dimension_semantics<parallel>, #tpu.dimension_semantics<parallel>], iteration_bounds = array<i64: 2, 2>, scalar_prefetch = 0 : i64, scratch_operands = 1 : i64, tpu.core_type = #tpu.core_type<tc>, window_params = [{transform_indices = @transform_0, window_bounds = array<i64: 1, 8, 4>}, {transform_indices = @transform_1, window_bounds = array<i64: 1, 8, 4>}, {pipeline_mode = #tpu.pipeline_mode<synchronous>, transform_indices = @transform_2, window_bounds = array<i64: 12, 256>}, {pipeline_mode = #tpu.pipeline_mode<synchronous>, transform_indices = @transform_3, window_bounds = array<i64: 1, 256>}, {pipeline_mode = #tpu.pipeline_mode<synchronous>, transform_indices = @transform_4, window_bounds = array<i64: 128, 256>}, {pipeline_mode = #tpu.pipeline_mode<synchronous>, transform_indices = @transform_5, window_bounds = array<i64: 1, 256>}, {transform_indices = @transform_6, window_bounds = array<i64: 1, 8, 4>}, {transform_indices = @transform_7, window_bounds = array<i64: 1, 8, 8>}]} {
    %c0 = arith.constant 0 : index
    %c0_0 = arith.constant 0 : index
    %c0_1 = arith.constant 0 : index
    %0 = vector.load %arg3[%c0, %c0_0, %c0_1] : memref<1x8x4xf32, #tpu.memory_space<vmem>>, vector<1x8x4xf32>
    %1 = vector.shape_cast %0 : vector<1x8x4xf32> to vector<8x4xf32>
    %2 = arith.truncf %1 : vector<8x4xf32> to vector<8x4xbf16>
    %c0_i32 = arith.constant 0 : i32
    %3 = arith.cmpi eq, %arg1, %c0_i32 : i32
    %4 = arith.extui %3 : i1 to i32
    %c0_i32_2 = arith.constant 0 : i32
    %5 = arith.cmpi ne, %4, %c0_i32_2 : i32
    scf.if %5 {
      %cst_26 = arith.constant 0.000000e+00 : bf16
      %44 = vector.broadcast %cst_26 : bf16 to vector<4x4xbf16>
      %c0_27 = arith.constant 0 : index
      %c0_28 = arith.constant 0 : index
      %45 = vector.load %arg10[%c0_27, %c0_28] : memref<8x12xbf16, #tpu.memory_space<vmem>>, vector<4x4xbf16>
      tpu.vector_store %arg10[%c0_27, %c0_28], %44 {strides = array<i32>} : memref<8x12xbf16, #tpu.memory_space<vmem>>, vector<4x4xbf16>,
      %cst_29 = arith.constant 0.000000e+00 : bf16
      %46 = vector.broadcast %cst_29 : bf16 to vector<2x4xbf16>
      %c0_30 = arith.constant 0 : index
      %c4_31 = arith.constant 4 : index
      %47 = vector.load %arg10[%c0_30, %c4_31] : memref<8x12xbf16, #tpu.memory_space<vmem>>, vector<2x4xbf16>
      tpu.vector_store %arg10[%c0_30, %c4_31], %46 {strides = array<i32>} : memref<8x12xbf16, #tpu.memory_space<vmem>>, vector<2x4xbf16>,
    } else {
    }
    %c0_i32_3 = arith.constant 0 : i32
    %6 = arith.cmpi sgt, %arg1, %c0_i32_3 : i32
    %7 = arith.extui %6 : i1 to i32
    %c0_i32_4 = arith.constant 0 : i32
    %8 = arith.cmpi ne, %7, %c0_i32_4 : i32
    scf.if %8 {
      %c0_26 = arith.constant 0 : index
      %c0_27 = arith.constant 0 : index
      %c0_28 = arith.constant 0 : index
      %44 = vector.load %arg2[%c0_26, %c0_27, %c0_28] : memref<1x8x4xf32, #tpu.memory_space<vmem>>, vector<1x8x4xf32>
      %45 = vector.shape_cast %44 : vector<1x8x4xf32> to vector<8x4xf32>
      %46 = vector.extract_strided_slice %45 {offsets = [4, 0], sizes = [4, 4], strides = [1, 1]} : vector<8x4xf32> to vector<4x4xf32>
      %47 = arith.truncf %46 : vector<4x4xf32> to vector<4x4xbf16>
      %c0_29 = arith.constant 0 : index
      %c0_30 = arith.constant 0 : index
      %48 = vector.load %arg10[%c0_29, %c0_30] : memref<8x12xbf16, #tpu.memory_space<vmem>>, vector<4x4xbf16>
      tpu.vector_store %arg10[%c0_29, %c0_30], %47 {strides = array<i32>} : memref<8x12xbf16, #tpu.memory_space<vmem>>, vector<4x4xbf16>,
      %49 = vector.extract_strided_slice %45 {offsets = [6, 0], sizes = [2, 4], strides = [1, 1]} : vector<8x4xf32> to vector<2x4xf32>
      %50 = arith.truncf %49 : vector<2x4xf32> to vector<2x4xbf16>
      %c0_31 = arith.constant 0 : index
      %c4_32 = arith.constant 4 : index
      %51 = vector.load %arg10[%c0_31, %c4_32] : memref<8x12xbf16, #tpu.memory_space<vmem>>, vector<2x4xbf16>
      tpu.vector_store %arg10[%c0_31, %c4_32], %50 {strides = array<i32>} : memref<8x12xbf16, #tpu.memory_space<vmem>>, vector<2x4xbf16>,
    } else {
    }
    %9 = vector.extract_strided_slice %2 {offsets = [0, 0], sizes = [4, 4], strides = [1, 1]} : vector<8x4xbf16> to vector<4x4xbf16>
    %c4 = arith.constant 4 : index
    %c0_5 = arith.constant 0 : index
    %10 = vector.load %arg10[%c4, %c0_5] : memref<8x12xbf16, #tpu.memory_space<vmem>>, vector<4x4xbf16>
    tpu.vector_store %arg10[%c4, %c0_5], %9 {strides = array<i32>} : memref<8x12xbf16, #tpu.memory_space<vmem>>, vector<4x4xbf16>,
    %11 = vector.extract_strided_slice %2 {offsets = [0, 0], sizes = [6, 4], strides = [1, 1]} : vector<8x4xbf16> to vector<6x4xbf16>
    %c2 = arith.constant 2 : index
    %c4_6 = arith.constant 4 : index
    %12 = vector.load %arg10[%c2, %c4_6] : memref<8x12xbf16, #tpu.memory_space<vmem>>, vector<6x4xbf16>
    tpu.vector_store %arg10[%c2, %c4_6], %11 {strides = array<i32>} : memref<8x12xbf16, #tpu.memory_space<vmem>>, vector<6x4xbf16>,
    %c0_7 = arith.constant 0 : index
    %c8 = arith.constant 8 : index
    %13 = vector.load %arg10[%c0_7, %c8] : memref<8x12xbf16, #tpu.memory_space<vmem>>, vector<8x4xbf16>
    tpu.vector_store %arg10[%c0_7, %c8], %2 {strides = array<i32>} : memref<8x12xbf16, #tpu.memory_space<vmem>>, vector<8x4xbf16>,
    %c0_8 = arith.constant 0 : index
    %c0_9 = arith.constant 0 : index
    %14 = vector.load %arg10[%c0_8, %c0_9] : memref<8x12xbf16, #tpu.memory_space<vmem>>, vector<8x12xbf16>
    %c0_10 = arith.constant 0 : index
    %c0_11 = arith.constant 0 : index
    %15 = vector.load %arg4[%c0_10, %c0_11] : memref<12x256xbf16, #tpu.memory_space<vmem>>, vector<12x256xbf16>
    %cst = arith.constant dense<0.000000e+00> : vector<8x256xf32>
    %16 = tpu.matmul %14, %15, %cst {dimension_numbers = #tpu.dot_dimension_numbers<[1], [0], [0], [1], [0, 0, 1, 1], [], []>} : vector<8x12xbf16>, vector<12x256xbf16>, vector<8x256xf32> -> vector<8x256xf32>
    %c0_12 = arith.constant 0 : index
    %c0_13 = arith.constant 0 : index
    %17 = vector.load %arg5[%c0_12, %c0_13] : memref<1x256xf32, #tpu.memory_space<vmem>>, vector<1x256xf32>
    %18 = vector.broadcast %17 : vector<1x256xf32> to vector<8x256xf32>
    %19 = arith.addf %16, %18 : vector<8x256xf32>
    %20 = arith.truncf %19 : vector<8x256xf32> to vector<8x256xbf16>
    %21 = vector.extract_strided_slice %20 {offsets = [0, 0], sizes = [8, 128], strides = [1, 1]} : vector<8x256xbf16> to vector<8x128xbf16>
    %22 = math.tanh %21 : vector<8x128xbf16>
    %23 = vector.extract_strided_slice %20 {offsets = [0, 128], sizes = [8, 128], strides = [1, 1]} : vector<8x256xbf16> to vector<8x128xbf16>
    %24 = arith.negf %23 : vector<8x128xbf16>
    %25 = math.exp %24 : vector<8x128xbf16>
    %cst_14 = arith.constant 1.000000e+00 : bf16
    %26 = vector.broadcast %cst_14 : bf16 to vector<8x128xbf16>
    %27 = arith.addf %26, %25 : vector<8x128xbf16>
    %28 = arith.divf %26, %27 : vector<8x128xbf16>
    %29 = arith.mulf %22, %28 : vector<8x128xbf16>
    %c0_15 = arith.constant 0 : index
    %c0_16 = arith.constant 0 : index
    %30 = vector.load %arg6[%c0_15, %c0_16] : memref<128x256xbf16, #tpu.memory_space<vmem>>, vector<128x256xbf16>
    %cst_17 = arith.constant dense<0.000000e+00> : vector<8x256xf32>
    %31 = tpu.matmul %29, %30, %cst_17 {dimension_numbers = #tpu.dot_dimension_numbers<[1], [0], [0], [1], [0, 0, 1, 1], [], []>} : vector<8x128xbf16>, vector<128x256xbf16>, vector<8x256xf32> -> vector<8x256xf32>
    %c0_18 = arith.constant 0 : index
    %c0_19 = arith.constant 0 : index
    %32 = vector.load %arg7[%c0_18, %c0_19] : memref<1x256xf32, #tpu.memory_space<vmem>>, vector<1x256xf32>
    %33 = vector.broadcast %32 : vector<1x256xf32> to vector<8x256xf32>
    %34 = arith.addf %31, %33 : vector<8x256xf32>
    %35 = vector.extract_strided_slice %34 {offsets = [0, 0], sizes = [8, 4], strides = [1, 1]} : vector<8x256xf32> to vector<8x4xf32>
    %36 = arith.addf %35, %1 : vector<8x4xf32>
    %c0_20 = arith.constant 0 : index
    %c0_21 = arith.constant 0 : index
    %c0_22 = arith.constant 0 : index
    %37 = vector.load %arg8[%c0_20, %c0_21, %c0_22] : memref<1x8x4xf32, #tpu.memory_space<vmem>>, vector<1x8x4xf32>
    %38 = vector.shape_cast %37 : vector<1x8x4xf32> to vector<8x4xf32>
    %39 = vector.shape_cast %36 : vector<8x4xf32> to vector<1x8x4xf32>
    tpu.vector_store %arg8[%c0_20, %c0_21, %c0_22], %39 {strides = array<i32>} : memref<1x8x4xf32, #tpu.memory_space<vmem>>, vector<1x8x4xf32>,
    %40 = vector.extract_strided_slice %34 {offsets = [0, 128], sizes = [8, 8], strides = [1, 1]} : vector<8x256xf32> to vector<8x8xf32>
    %c0_23 = arith.constant 0 : index
    %c0_24 = arith.constant 0 : index
    %c0_25 = arith.constant 0 : index
    %41 = vector.load %arg9[%c0_23, %c0_24, %c0_25] : memref<1x8x8xf32, #tpu.memory_space<vmem>>, vector<1x8x8xf32>
    %42 = vector.shape_cast %41 : vector<1x8x8xf32> to vector<8x8xf32>
    %43 = vector.shape_cast %40 : vector<8x8xf32> to vector<1x8x8xf32>
    tpu.vector_store %arg9[%c0_23, %c0_24, %c0_25], %43 {strides = array<i32>} : memref<1x8x8xf32, #tpu.memory_space<vmem>>, vector<1x8x8xf32>,
    return
  }
  func.func @transform_0(%arg0: i32, %arg1: i32) -> (i32, i32, i32) {
    %c1_i32 = arith.constant 1 : i32
    %0 = arith.muli %arg1, %c1_i32 : i32
    %c1_i32_0 = arith.constant 1 : i32
    %1 = arith.subi %0, %c1_i32_0 : i32
    %c0_i32 = arith.constant 0 : i32
    %2 = arith.maxsi %1, %c0_i32 : i32
    %c0_i32_1 = arith.constant 0 : i32
    %c0_i32_2 = arith.constant 0 : i32
    return %arg0, %2, %c0_i32_1 : i32, i32, i32
  }
  func.func @transform_1(%arg0: i32, %arg1: i32) -> (i32, i32, i32) {
    %c0_i32 = arith.constant 0 : i32
    %c0_i32_0 = arith.constant 0 : i32
    return %arg0, %arg1, %c0_i32 : i32, i32, i32
  }
  func.func @transform_2(%arg0: i32, %arg1: i32) -> (i32, i32) {
    %c0_i32 = arith.constant 0 : i32
    %c0_i32_0 = arith.constant 0 : i32
    %c0_i32_1 = arith.constant 0 : i32
    return %c0_i32, %c0_i32_0 : i32, i32
  }
  func.func @transform_3(%arg0: i32, %arg1: i32) -> (i32, i32) {
    %c0_i32 = arith.constant 0 : i32
    %c0_i32_0 = arith.constant 0 : i32
    %c0_i32_1 = arith.constant 0 : i32
    return %c0_i32, %c0_i32_0 : i32, i32
  }
  func.func @transform_4(%arg0: i32, %arg1: i32) -> (i32, i32) {
    %c0_i32 = arith.constant 0 : i32
    %c0_i32_0 = arith.constant 0 : i32
    %c0_i32_1 = arith.constant 0 : i32
    return %c0_i32, %c0_i32_0 : i32, i32
  }
  func.func @transform_5(%arg0: i32, %arg1: i32) -> (i32, i32) {
    %c0_i32 = arith.constant 0 : i32
    %c0_i32_0 = arith.constant 0 : i32
    %c0_i32_1 = arith.constant 0 : i32
    return %c0_i32, %c0_i32_0 : i32, i32
  }
  func.func @transform_6(%arg0: i32, %arg1: i32) -> (i32, i32, i32) {
    %c0_i32 = arith.constant 0 : i32
    %c0_i32_0 = arith.constant 0 : i32
    return %arg0, %arg1, %c0_i32 : i32, i32, i32
  }
  func.func @transform_7(%arg0: i32, %arg1: i32) -> (i32, i32, i32) {
    %c0_i32 = arith.constant 0 : i32
    %c0_i32_0 = arith.constant 0 : i32
    return %arg0, %arg1, %c0_i32 : i32, i32, i32
  }
}

</mosaic_0001>

<llo_original>
// kernel: tpu_custom_call.1
$region0: #{tpu_custom_call.1}
  #allocation0 [shape = 'u32[]', space=smem, size = 0x4, offset = 0x4, fixed_abs, tag = 'smem constant byte address 0x4 - core index']
  #allocation1 [shape = 'u32[72,128]{1,0:T(1,128)}', space=vmem, size = 0x9000, scoped, tag = 'internal scratch']
  #allocation2 [shape = 'bf16[8,12]{1,0:T(8,128)(2,1)}', space=vmem, size = 0x800, scoped, tag = 'scratch operand']
  %s0 = inlined_call_operand.vmem [shape: f32[2,16,4], index: 0, kind: input, shape index: {}]
  %s1 = inlined_call_operand.vmem [shape: f32[2,16,4], index: 1, kind: input, shape index: {}]
  %s2 = inlined_call_operand.vmem [shape: bf16[12,256], index: 2, kind: input, shape index: {}]
  %s3 = inlined_call_operand.vmem [shape: f32[1,256], index: 3, kind: input, shape index: {}]
  %s4 = inlined_call_operand.hbm [shape: bf16[128,256], index: 4, kind: input, shape index: {}]
  %s5 = inlined_call_operand.vmem [shape: f32[1,256], index: 5, kind: input, shape index: {}]
  %s6 = inlined_call_operand.vmem [shape: f32[2,16,4], index: 6, kind: output, shape index: {0}]
  %s7 = inlined_call_operand.vmem [shape: f32[2,16,8], index: 7, kind: output, shape index: {1}]
  %8 = xla_tuple %s6, %s7
  %s9 = sld [smem:[#allocation0]]
  $region77: #{tpu_custom_call.1} parent=0
    _
  %s11 = ssub.s32 1, %s9
  %s12 = scalar_select 0, %s11, %s9
  $region1: #{tpu_custom_call.1} parent=0
    #allocation3 [shape = 'u8[65536]{0}', space=vmem, size = 0x10000, scoped, tag = 'input window, operand 4, single buffered']
    #allocation4 [shape = 's32[2]{0}', space=sflag, size = 0x8, scoped, tag = 'scoped memory for tpu_custom_call.1']
    %13 = vsyncpa [#allocation4], 0
    loop: start=0, step=1, limit=6
    $region2: #{tpu_custom_call.1} parent=1 // loop_pre_header
      _
    $region3: #{tpu_custom_call.1} parent=1 // loop_header
      %s15 = sphi 0, %s19
      %p16 = scmp.ge.s32.totalorder %s15, 6
      %s22 = sphi 0, %s34
      %s23 = sphi 0, %s30
      %s24 = sphi 0, %s22
      %s25 = sphi 0, %s23
      %s26 = sphi 0, %s24
      %s27 = sphi 0, %s25
      %s45 = sphi 0, %s47
      %s48 = sphi 0, %s45
      %s49 = sphi 0, %s48
      %s65 = sphi 0, %s49
      %s73 = sphi 0, %s75
      %s76 = sphi 0, %s73
      %s77 = sphi 0, %s76
      %s93 = sphi 0, %s77
      %s97 = sphi 0, %s97
      %s99 = sphi 0, %s97
      %s100 = sphi 0, %s99
      %s114 = sphi 0, %s100
      %s118 = sphi 0, %s118
      %s120 = sphi 0, %s118
      %s121 = sphi 0, %s120
      %s135 = sphi 0, %s121
      %s139 = sphi 0, %s139
      %s141 = sphi 0, %s139
      %s142 = sphi 0, %s141
      %s156 = sphi 0, %s142
      %s160 = sphi 0, %s160
      %s162 = sphi 0, %s160
      %s163 = sphi 0, %s162
      %s177 = sphi 0, %s163
      %s185 = sphi 0, %s187
      %s188 = sphi 0, %s185
      %s189 = sphi 0, %s188
      %s205 = sphi 0, %s189
      %s213 = sphi 0, %s215
      %s216 = sphi 0, %s213
      %s217 = sphi 0, %s216
      %s233 = sphi 0, %s217
    $region4: #{tpu_custom_call.1} parent=1 // loop_header_branch
      %18 = sbr.rel (%p16) target = $region8
    $region5: #{tpu_custom_call.1} parent=1 // loop_body
      %s20 = ssub.s32 %s15, 1
      %s21 = ssub.s32 %s15, 2
      %s28 = sadd.s32 1, %s23
      %p29 = scmp.ge.s32.totalorder %s28, 2
      %s30 = scalar_select %p29, 0, %s28
      %s31 = sadd.s32 1, %s22
      %s32 = scalar_select %p29, %s31, %s22
      %p33 = scmp.ge.s32.totalorder %s32, 2
      %s34 = scalar_select %p33, 0, %s32
      %s35 = ssub.s32 %s23, 1
      %p36 = scmp.gt.s32.totalorder %s35, 0
      %s37 = scalar_select %p36, %s35, 0
      %s38 = ssub.s32 %s30, 1
      %p39 = scmp.gt.s32.totalorder %s38, 0
      %s40 = scalar_select %p39, %s38, 0
      %s41 = ssub.s32 %s22, %s34
      %s42 = ssub.s32 %s37, %s40
      %s43 = sor.u32 %s41, %s42
      %p44 = scmp.eq.s32.totalorder %s43, 0
      %s46 = sadd.s32 %s45, 1
      %s47 = scalar_select %p44, %s45, %s46
      %p50 = pneg %p44
      %p51 = scmp.eq.s32.totalorder %s15, 3
      %p52 = por %p50, %p51
      %p53 = scmp.ne.s32.totalorder %s45, %s48
      %p54 = scmp.eq.s32.totalorder %s15, 0
      %p55 = por %p53, %p54
      %p56 = scmp.ne.s32.totalorder %s45, %s48
      %p57 = scmp.eq.s32.totalorder %s20, 3
      %p58 = por %p56, %p57
      %p59 = scmp.ne.s32.totalorder %s48, %s49
      %p60 = scmp.eq.s32.totalorder %s20, 0
      %p61 = por %p59, %p60
      %p62 = scmp.ne.s32.totalorder %s48, %s49
      %p63 = scmp.eq.s32.totalorder %s21, 3
      %p64 = por %p62, %p63
      %p66 = scmp.ne.s32.totalorder %s49, %s65
      %p67 = scmp.eq.s32.totalorder %s21, 0
      %p68 = por %p66, %p67
      %s69 = ssub.s32 %s22, %s34
      %s70 = ssub.s32 %s23, %s30
      %s71 = sor.u32 %s69, %s70
      %p72 = scmp.eq.s32.totalorder %s71, 0
      %s74 = sadd.s32 %s73, 1
      %s75 = scalar_select %p72, %s73, %s74
      %p78 = pneg %p72
      %p79 = scmp.eq.s32.totalorder %s15, 3
      %p80 = por %p78, %p79
      %p81 = scmp.ne.s32.totalorder %s73, %s76
      %p82 = scmp.eq.s32.totalorder %s15, 0
      %p83 = por %p81, %p82
      %p84 = scmp.ne.s32.totalorder %s73, %s76
      %p85 = scmp.eq.s32.totalorder %s20, 3
      %p86 = por %p84, %p85
      %p87 = scmp.ne.s32.totalorder %s76, %s77
      %p88 = scmp.eq.s32.totalorder %s20, 0
      %p89 = por %p87, %p88
      %p90 = scmp.ne.s32.totalorder %s76, %s77
      %p91 = scmp.eq.s32.totalorder %s21, 3
      %p92 = por %p90, %p91
      %p94 = scmp.ne.s32.totalorder %s77, %s93
      %p95 = scmp.eq.s32.totalorder %s21, 0
      %p96 = por %p94, %p95
      %s98 = sadd.s32 %s97, 1
      %p101 = scmp.eq.s32.totalorder %s15, 3
      %p102 = scmp.ne.s32.totalorder %s97, %s99
      %p103 = scmp.eq.s32.totalorder %s15, 0
      %p104 = por %p102, %p103
      %p105 = scmp.ne.s32.totalorder %s97, %s99
      %p106 = scmp.eq.s32.totalorder %s20, 3
      %p107 = por %p105, %p106
      %p108 = scmp.ne.s32.totalorder %s99, %s100
      %p109 = scmp.eq.s32.totalorder %s20, 0
      %p110 = por %p108, %p109
      %p111 = scmp.ne.s32.totalorder %s99, %s100
      %p112 = scmp.eq.s32.totalorder %s21, 3
      %p113 = por %p111, %p112
      %p115 = scmp.ne.s32.totalorder %s100, %s114
      %p116 = scmp.eq.s32.totalorder %s21, 0
      %p117 = por %p115, %p116
      %s119 = sadd.s32 %s118, 1
      %p122 = scmp.eq.s32.totalorder %s15, 3
      %p123 = scmp.ne.s32.totalorder %s118, %s120
      %p124 = scmp.eq.s32.totalorder %s15, 0
      %p125 = por %p123, %p124
      %p126 = scmp.ne.s32.totalorder %s118, %s120
      %p127 = scmp.eq.s32.totalorder %s20, 3
      %p128 = por %p126, %p127
      %p129 = scmp.ne.s32.totalorder %s120, %s121
      %p130 = scmp.eq.s32.totalorder %s20, 0
      %p131 = por %p129, %p130
      %p132 = scmp.ne.s32.totalorder %s120, %s121
      %p133 = scmp.eq.s32.totalorder %s21, 3
      %p134 = por %p132, %p133
      %p136 = scmp.ne.s32.totalorder %s121, %s135
      %p137 = scmp.eq.s32.totalorder %s21, 0
      %p138 = por %p136, %p137
      %s140 = sadd.s32 %s139, 1
      %p143 = scmp.eq.s32.totalorder %s15, 3
      %p144 = scmp.ne.s32.totalorder %s139, %s141
      %p145 = scmp.eq.s32.totalorder %s15, 0
      %p146 = por %p144, %p145
      %p147 = scmp.ne.s32.totalorder %s139, %s141
      %p148 = scmp.eq.s32.totalorder %s20, 3
      %p149 = por %p147, %p148
      %p150 = scmp.ne.s32.totalorder %s141, %s142
      %p151 = scmp.eq.s32.totalorder %s20, 0
      %p152 = por %p150, %p151
      %p153 = scmp.ne.s32.totalorder %s141, %s142
      %p154 = scmp.eq.s32.totalorder %s21, 3
      %p155 = por %p153, %p154
      %p157 = scmp.ne.s32.totalorder %s142, %s156
      %p158 = scmp.eq.s32.totalorder %s21, 0
      %p159 = por %p157, %p158
      %s161 = sadd.s32 %s160, 1
      %p164 = scmp.eq.s32.totalorder %s15, 3
      %p165 = scmp.ne.s32.totalorder %s160, %s162
      %p166 = scmp.eq.s32.totalorder %s15, 0
      %p167 = por %p165, %p166
      %p168 = scmp.ne.s32.totalorder %s160, %s162
      %p169 = scmp.eq.s32.totalorder %s20, 3
      %p170 = por %p168, %p169
      %p171 = scmp.ne.s32.totalorder %s162, %s163
      %p172 = scmp.eq.s32.totalorder %s20, 0
      %p173 = por %p171, %p172
      %p174 = scmp.ne.s32.totalorder %s162, %s163
      %p175 = scmp.eq.s32.totalorder %s21, 3
      %p176 = por %p174, %p175
      %p178 = scmp.ne.s32.totalorder %s163, %s177
      %p179 = scmp.eq.s32.totalorder %s21, 0
      %p180 = por %p178, %p179
      %s181 = ssub.s32 %s22, %s34
      %s182 = ssub.s32 %s23, %s30
      %s183 = sor.u32 %s181, %s182
      %p184 = scmp.eq.s32.totalorder %s183, 0
      %s186 = sadd.s32 %s185, 1
      %s187 = scalar_select %p184, %s185, %s186
      %p190 = pneg %p184
      %p191 = scmp.eq.s32.totalorder %s15, 3
      %p192 = por %p190, %p191
      %p193 = scmp.ne.s32.totalorder %s185, %s188
      %p194 = scmp.eq.s32.totalorder %s15, 0
      %p195 = por %p193, %p194
      %p196 = scmp.ne.s32.totalorder %s185, %s188
      %p197 = scmp.eq.s32.totalorder %s20, 3
      %p198 = por %p196, %p197
      %p199 = scmp.ne.s32.totalorder %s188, %s189
      %p200 = scmp.eq.s32.totalorder %s20, 0
      %p201 = por %p199, %p200
      %p202 = scmp.ne.s32.totalorder %s188, %s189
      %p203 = scmp.eq.s32.totalorder %s21, 3
      %p204 = por %p202, %p203
      %p206 = scmp.ne.s32.totalorder %s189, %s205
      %p207 = scmp.eq.s32.totalorder %s21, 0
      %p208 = por %p206, %p207
      %s209 = ssub.s32 %s22, %s34
      %s210 = ssub.s32 %s23, %s30
      %s211 = sor.u32 %s209, %s210
      %p212 = scmp.eq.s32.totalorder %s211, 0
      %s214 = sadd.s32 %s213, 1
      %s215 = scalar_select %p212, %s213, %s214
      %p218 = pneg %p212
      %p219 = scmp.eq.s32.totalorder %s15, 3
      %p220 = por %p218, %p219
      %p221 = scmp.ne.s32.totalorder %s213, %s216
      %p222 = scmp.eq.s32.totalorder %s15, 0
      %p223 = por %p221, %p222
      %p224 = scmp.ne.s32.totalorder %s213, %s216
      %p225 = scmp.eq.s32.totalorder %s20, 3
      %p226 = por %p224, %p225
      %p227 = scmp.ne.s32.totalorder %s216, %s217
      %p228 = scmp.eq.s32.totalorder %s20, 0
      %p229 = por %p227, %p228
      %p230 = scmp.ne.s32.totalorder %s216, %s217
      %p231 = scmp.eq.s32.totalorder %s21, 3
      %p232 = por %p230, %p231
      %p234 = scmp.ne.s32.totalorder %s217, %s233
      %p235 = scmp.eq.s32.totalorder %s21, 0
      %p236 = por %p234, %p235
      %p237 = scmp.le.s32.totalorder 1, %s15
      %p238 = scmp.lt.s32.totalorder %s15, 5
      %p239 = pnand %p237, %p238
      %p240 = pneg %p239
      // Predicated region
      $region9: #{tpu_custom_call.1} parent=5 // pred_check
        _
      $region10: #{tpu_custom_call.1} parent=5 // pred_check_branch
        %242 = sbr.rel (%p239) target = $region12
      $region11: #{tpu_custom_call.1} parent=5 // pred_region
        %s243 = ssub.s32 %s15, 1
        // Predicated region
        $region13: #{tpu_custom_call.1} parent=11 // pred_check
          %p244 = pneg %p110
        $region14: #{tpu_custom_call.1} parent=11 // pred_check_branch
          %246 = sbr.rel (%p244) target = $region16
        $region15: #{tpu_custom_call.1} parent=11 // pred_region
          _
        $region16: #{tpu_custom_call.1} parent=11 // pred_fallthru
          _
        // Predicated region
        $region17: #{tpu_custom_call.1} parent=11 // pred_check
          %p247 = pneg %p131
        $region18: #{tpu_custom_call.1} parent=11 // pred_check_branch
          %249 = sbr.rel (%p247) target = $region20
        $region19: #{tpu_custom_call.1} parent=11 // pred_region
          _
        $region20: #{tpu_custom_call.1} parent=11 // pred_fallthru
          _
        // Predicated region
        $region21: #{tpu_custom_call.1} parent=11 // pred_check
          %p250 = pneg %p152
        $region22: #{tpu_custom_call.1} parent=11 // pred_check_branch
          %252 = sbr.rel (%p250) target = $region24
        $region23: #{tpu_custom_call.1} parent=11 // pred_region
          %254 = vsyncadd [#allocation4], 0
          %s255 = sshll.u32 %s4, 4
          %s256 = int_to_ptr.hbm [resolvable:$true] %s255
          %s257 = sshll.u32 [#allocation3], 4
          %s258 = int_to_ptr.vmem [resolvable:$true] %s257
          %263 = dma.hbm_to_vmem [thread:$0]  %s256, 2048, %s258, [#allocation4], 128, 128, 8
        $region24: #{tpu_custom_call.1} parent=11 // pred_fallthru
          _
        // Predicated region
        $region25: #{tpu_custom_call.1} parent=11 // pred_check
          %p264 = pneg %p173
        $region26: #{tpu_custom_call.1} parent=11 // pred_check_branch
          %266 = sbr.rel (%p264) target = $region28
        $region27: #{tpu_custom_call.1} parent=11 // pred_region
          _
        $region28: #{tpu_custom_call.1} parent=11 // pred_fallthru
          _
      $region12: #{tpu_custom_call.1} parent=5 // pred_fallthru
        _
      %p267 = scmp.lt.s32.totalorder %s15, 4
      // Predicated region
      $region29: #{tpu_custom_call.1} parent=5 // pred_check
        %p268 = pneg %p267
      $region30: #{tpu_custom_call.1} parent=5 // pred_check_branch
        %270 = sbr.rel (%p268) target = $region32
      $region31: #{tpu_custom_call.1} parent=5 // pred_region
        // Predicated region
        $region33: #{tpu_custom_call.1} parent=31 // pred_check
          %p271 = pneg %p55
        $region34: #{tpu_custom_call.1} parent=31 // pred_check_branch
          %273 = sbr.rel (%p271) target = $region36
        $region35: #{tpu_custom_call.1} parent=31 // pred_region
          %s274 = ssub.s32 %s23, 1
          %p275 = scmp.gt.s32.totalorder %s274, 0
          %s276 = scalar_select %p275, %s274, 0
          %p277 = scmp.lt.s32.totalorder %s22, 1
          %s278 = scalar_select %p277, %s22, 1
          %p279 = scmp.lt.s32.totalorder %s276, 1
          %s280 = scalar_select %p279, %s276, 1
          %s281 = smul.addr %s278, 2
          %s282 = sadd.s32 %s280, %s281
          %s283 = smul.addr %s282, 8
          %s284 = scalar_lea.vmem %s0, %s283
          %s285 = ssub.s32 %s23, 1
          %p286 = scmp.gt.s32.totalorder %s285, 0
          %s287 = scalar_select %p286, %s285, 0
        $region36: #{tpu_custom_call.1} parent=31 // pred_fallthru
          _
        // Predicated region
        $region37: #{tpu_custom_call.1} parent=31 // pred_check
          %p288 = pneg %p83
        $region38: #{tpu_custom_call.1} parent=31 // pred_check_branch
          %290 = sbr.rel (%p288) target = $region40
        $region39: #{tpu_custom_call.1} parent=31 // pred_region
          %p291 = scmp.lt.s32.totalorder %s22, 1
          %s292 = scalar_select %p291, %s22, 1
          %p293 = scmp.lt.s32.totalorder %s23, 1
          %s294 = scalar_select %p293, %s23, 1
          %s295 = smul.addr %s292, 2
          %s296 = sadd.s32 %s294, %s295
          %s297 = smul.addr %s296, 8
          %s298 = scalar_lea.vmem %s1, %s297
        $region40: #{tpu_custom_call.1} parent=31 // pred_fallthru
          _
      $region32: #{tpu_custom_call.1} parent=5 // pred_fallthru
        _
      %p299 = scmp.le.s32.totalorder 1, %s15
      %p300 = scmp.lt.s32.totalorder %s15, 5
      %p301 = pnand %p299, %p300
      %p302 = pneg %p301
      // Predicated region
      $region41: #{tpu_custom_call.1} parent=5 // pred_check
        _
      $region42: #{tpu_custom_call.1} parent=5 // pred_check_branch
        %304 = sbr.rel (%p301) target = $region44
      $region43: #{tpu_custom_call.1} parent=5 // pred_region
        %s305 = ssub.s32 %s15, 1
        // Predicated region
        $region45: #{tpu_custom_call.1} parent=43 // pred_check
          %p306 = pneg %p152
        $region46: #{tpu_custom_call.1} parent=43 // pred_check_branch
          %308 = sbr.rel (%p306) target = $region48
        $region47: #{tpu_custom_call.1} parent=43 // pred_region
          %310 = dma.done [#allocation4], 2048
        $region48: #{tpu_custom_call.1} parent=43 // pred_fallthru
          _
        %s311 = ssub.s32 %s25, 1
        %p312 = scmp.gt.s32.totalorder %s311, 0
        %s313 = scalar_select %p312, %s311, 0
        %p314 = scmp.lt.s32.totalorder %s24, 1
        %s315 = scalar_select %p314, %s24, 1
        %p316 = scmp.lt.s32.totalorder %s313, 1
        %s317 = scalar_select %p316, %s313, 1
        %s318 = smul.addr %s315, 2
        %s319 = sadd.s32 %s317, %s318
        %s320 = smul.addr %s319, 8
        %s321 = scalar_lea.vmem %s0, %s320
        %p322 = pneg %p61
        %p323 = pneg %p58
        %p324 = scmp.lt.s32.totalorder %s24, 1
        %s325 = scalar_select %p324, %s24, 1
        %p326 = scmp.lt.s32.totalorder %s25, 1
        %s327 = scalar_select %p326, %s25, 1
        %s328 = smul.addr %s325, 2
        %s329 = sadd.s32 %s327, %s328
        %s330 = smul.addr %s329, 8
        %s331 = scalar_lea.vmem %s1, %s330
        %p332 = pneg %p89
        %p333 = pneg %p86
        %p334 = pneg %p110
        %p335 = pneg %p107
        %p336 = pneg %p131
        %p337 = pneg %p128
        %p338 = pneg %p152
        %p339 = pneg %p149
        %p340 = pneg %p173
        %p341 = pneg %p170
        %p342 = pneg %p201
        %p343 = pneg %p198
        %p344 = scmp.lt.s32.totalorder %s24, 1
        %s345 = scalar_select %p344, %s24, 1
        %p346 = scmp.lt.s32.totalorder %s25, 1
        %s347 = scalar_select %p346, %s25, 1
        %s348 = smul.addr %s345, 2
        %s349 = sadd.s32 %s347, %s348
        %s350 = smul.addr %s349, 8
        %s351 = scalar_lea.vmem %s6, %s350
        %p352 = pneg %p229
        %p353 = pneg %p226
        %p354 = scmp.lt.s32.totalorder %s24, 1
        %s355 = scalar_select %p354, %s24, 1
        %p356 = scmp.lt.s32.totalorder %s25, 1
        %s357 = scalar_select %p356, %s25, 1
        %s358 = smul.addr %s355, 2
        %s359 = sadd.s32 %s357, %s358
        %s360 = smul.addr %s359, 8
        %s361 = scalar_lea.vmem %s7, %s360
        %s362 = ssub.s32 %s25, 1
        %p363 = scmp.gt.s32.totalorder %s362, 0
        %s364 = scalar_select %p363, %s362, 0
        %p365 = scmp.lt.s32.totalorder %s24, 1
        %s366 = scalar_select %p365, %s24, 1
        %p367 = scmp.lt.s32.totalorder %s364, 1
        %s368 = scalar_select %p367, %s364, 1
        %s369 = smul.addr %s366, 2
        %s370 = sadd.s32 %s368, %s369
        %s371 = smul.addr %s370, 8
        %s372 = scalar_lea.vmem %s0, %s371
        %s373 = ssub.s32 %s25, 1
        %p374 = scmp.gt.s32.totalorder %s373, 0
        %s375 = scalar_select %p374, %s373, 0
        %p376 = scmp.lt.s32.totalorder %s24, 1
        %s377 = scalar_select %p376, %s24, 1
        %p378 = scmp.lt.s32.totalorder %s25, 1
        %s379 = scalar_select %p378, %s25, 1
        %s380 = smul.addr %s377, 2
        %s381 = sadd.s32 %s379, %s380
        %s382 = smul.addr %s381, 8
        %s383 = scalar_lea.vmem %s1, %s382
        %p384 = scmp.lt.s32.totalorder %s24, 1
        %s385 = scalar_select %p384, %s24, 1
        %p386 = scmp.lt.s32.totalorder %s25, 1
        %s387 = scalar_select %p386, %s25, 1
        %s388 = smul.addr %s385, 2
        %s389 = sadd.s32 %s387, %s388
        %s390 = smul.addr %s389, 8
        %s391 = scalar_lea.vmem %s6, %s390
        %p392 = scmp.lt.s32.totalorder %s24, 1
        %s393 = scalar_select %p392, %s24, 1
        %p394 = scmp.lt.s32.totalorder %s25, 1
        %s395 = scalar_select %p394, %s25, 1
        %s396 = smul.addr %s393, 2
        %s397 = sadd.s32 %s395, %s396
        %s398 = smul.addr %s397, 8
        %s399 = scalar_lea.vmem %s7, %s398
        %v402 = vld [vmem:[%s383] sm:$0xff]
        %v403 = vpack.c.bf16 %v402, %v402
        %p404 = scmp.eq.s32.totalorder %s25, 0
        // Predicated region
        $region49: #{tpu_custom_call.1} parent=43 // pred_check
          %p405 = pneg %p404
        $region50: #{tpu_custom_call.1} parent=43 // pred_check_branch
          %407 = sbr.rel (%p405) target = $region52
        $region51: #{tpu_custom_call.1} parent=43 // pred_region
          %vm408 = vcmask 25600
          %409 = vst.msk [vmem:[#allocation2] sm:$0x3] %vm408, 0
          %vm410 = vcmask 57376
          %411 = vst.msk [vmem:[#allocation2] sm:$0x1] %vm410, 0
        $region52: #{tpu_custom_call.1} parent=43 // pred_fallthru
          _
        %p412 = scmp.gt.s32.totalorder %s25, 0
        // Predicated region
        $region53: #{tpu_custom_call.1} parent=43 // pred_check
          %p413 = pneg %p412
        $region54: #{tpu_custom_call.1} parent=43 // pred_check_branch
          %415 = sbr.rel (%p413) target = $region56
        $region55: #{tpu_custom_call.1} parent=43 // pred_region
          %v416 = vld [vmem:[%s372] sm:$0xff]
          %v417 = vpack.c.bf16 %v416, %v416
          %v419 = vrot.slane %v417, 6
          %v420 = vrot.slane %v419, 4
          %vm422 = vcmask 25600
          %423 = vst.msk [vmem:[#allocation2] sm:$0x3] %vm422, %v420
          %v424 = vrot.slane %v417, 7
          %v425 = vrot.slane %v424, 4
          %426 = vrot.lane.b32.xlu0 %v425, 4
          %v427 = vpop.permute.xlu0 %426
          %vm429 = vcmask 57376
          %430 = vst.msk [vmem:[#allocation2] sm:$0x1] %vm429, %v427
        $region56: #{tpu_custom_call.1} parent=43 // pred_fallthru
          _
        %v432 = vrot.slane %v403, 6
        %vm434 = vcmask 27650
        %435 = vst.msk [vmem:[#allocation2] sm:$0xc] %vm434, %v432
        %v436 = vrot.slane %v403, 7
        %437 = vrot.lane.b32.xlu0 %v436, 4
        %v438 = vpop.permute.xlu0 %437
        %vm440 = vcmask 60449
        %441 = vst.msk [vmem:[#allocation2] sm:$0xe] %vm440, %v438
        %442 = vrot.lane.b32.xlu0 %v403, 8
        %v443 = vpop.permute.xlu0 %442
        %vm445 = vcmask 93248
        %446 = vst.msk [vmem:[#allocation2] sm:$0xf] %vm445, %v443
        %v447 = vld [vmem:[#allocation2] sm:$0xf]
        %v448 = vld [vmem:[%s2] sm:$0xff]
        %v449 = vld [vmem:[%s2 + $0x8] sm:$0x33]
        %v450 = vld [vmem:[%s3] sm:$0x3]
        %v452 = vperm.slane %v450, 0
        %v453 = vperm.slane %v450, 1
        %v458 = vunpack.c.l.b16 %v448
        %v459 = vunpack.c.h.b16 %v448
        %v460 = vunpack.c.l.b16 %v449
        %v461 = vunpack.c.h.b16 %v449
        %v462 = vpack.c.b16 %v460, %v458
        %v463 = vpack.c.b16 %v461, %v459
        %vm464 = vcmask 97280
        %v466 = vsel %vm464, %v447, 0
        %vm468 = vcmask 1045504
        %v470 = vsel %vm468, %v462, 0
        %v473 = vsel %vm468, %v463, 0
        %475 = vmatpush.bf16.msra.mxu0 0
        %476 = vmatpush.bf16.msra.mxu0 0
        %477 = vmatpush.bf16.msra.mxu0 0
        %478 = vmatpush.bf16.msra.mxu0 0
        %479 = vmatpush.bf16.msra.mxu0 0
        %480 = vmatpush.bf16.msra.mxu0 0
        %481 = vmatpush.bf16.msra.mxu0 0
        %482 = vmatpush.bf16.msra.mxu0 %v470
        %483 = vmatmul.bf16.gmra.mxu0 %v466
        %v484 = vpop.f32.mrf.mxu0
        %v485 = vadd.f32 %v452, %v484
        %v486 = vpop.f32.mrf.mxu0
        %487 = vdwg.mxu0
        %488 = vmatpush.bf16.msra.mxu0 0
        %489 = vmatpush.bf16.msra.mxu0 0
        %490 = vmatpush.bf16.msra.mxu0 0
        %491 = vmatpush.bf16.msra.mxu0 0
        %492 = vmatpush.bf16.msra.mxu0 0
        %493 = vmatpush.bf16.msra.mxu0 0
        %494 = vmatpush.bf16.msra.mxu0 0
        %495 = vmatpush.bf16.msra.mxu0 %v473
        %496 = vmatmul.bf16.gmra.mxu0 %v466
        %v497 = vpop.f32.mrf.mxu0
        %v498 = vadd.f32 %v453, %v497
        %v499 = vpop.f32.mrf.mxu0
        %500 = vdwg.mxu0
        %v501 = vpack.c.bf16 %v498, %v485
        %v502 = vunpack.c.l.bf16 %v501
        %v503 = vtanh.pop %v502
        %v504 = vpack.c.bf16 %v503, %v503
        %v506 = vrot.slane %v501, 4
        %v508 = vxor.u32 %v506, 2147516416
        %v509 = vunpack.c.l.bf16 %v508
        %v510 = vmul.f32 %v509, 1.442695
        %v511 = vpow.pop %v510
        %v512 = vpack.c.bf16 %v511, %v511
        %v513 = vunpack.c.l.bf16 %v512
        %v514 = vadd.f32 %v513, 1.0
        %v515 = vpack.c.bf16 %v514, %v514
        %v516 = vunpack.c.h.bf16 1065369472
        %v517 = vunpack.c.l.bf16 1065369472
        %v518 = vunpack.c.h.bf16 %v515
        %v519 = vunpack.c.l.bf16 %v515
        %v520 = vrcp.pop %v518
        %v521 = vmul.f32 %v516, %v520
        %v522 = vrcp.pop %v519
        %v523 = vmul.f32 %v517, %v522
        %v524 = vpack.c.bf16 %v521, %v523
        %v525 = vunpack.c.l.bf16 %v504
        %v526 = vunpack.c.l.bf16 %v524
        %v527 = vmul.f32 %v525, %v526
        %v528 = vpack.c.bf16 %v527, %v527
        %v529 = vld [vmem:[#allocation3] sm:$0xff]
        %v530 = vld [vmem:[#allocation3 + $0x8] sm:$0xff]
        %v531 = vld [vmem:[#allocation3 + $0x10] sm:$0xff]
        %v532 = vld [vmem:[#allocation3 + $0x18] sm:$0xff]
        %v533 = vld [vmem:[#allocation3 + $0x20] sm:$0xff]
        %v534 = vld [vmem:[#allocation3 + $0x28] sm:$0xff]
        %v535 = vld [vmem:[#allocation3 + $0x30] sm:$0xff]
        %v536 = vld [vmem:[#allocation3 + $0x38] sm:$0xff]
        %v537 = vld [vmem:[#allocation3 + $0x40] sm:$0xff]
        %v538 = vld [vmem:[#allocation3 + $0x48] sm:$0xff]
        %v539 = vld [vmem:[#allocation3 + $0x50] sm:$0xff]
        %v540 = vld [vmem:[#allocation3 + $0x58] sm:$0xff]
        %v541 = vld [vmem:[#allocation3 + $0x60] sm:$0xff]
        %v542 = vld [vmem:[#allocation3 + $0x68] sm:$0xff]
        %v543 = vld [vmem:[#allocation3 + $0x70] sm:$0xff]
        %v544 = vld [vmem:[#allocation3 + $0x78] sm:$0xff]
        %v545 = vld [vmem:[%s5] sm:$0x3]
        %v547 = vperm.slane %v545, 0
        %v548 = vperm.slane %v545, 1
        %v567 = vunpack.c.l.b16 %v529
        %v568 = vunpack.c.h.b16 %v529
        %v569 = vunpack.c.l.b16 %v530
        %v570 = vunpack.c.h.b16 %v530
        %v571 = vunpack.c.l.b16 %v531
        %v572 = vunpack.c.h.b16 %v531
        %v573 = vunpack.c.l.b16 %v532
        %v574 = vunpack.c.h.b16 %v532
        %v575 = vunpack.c.l.b16 %v533
        %v576 = vunpack.c.h.b16 %v533
        %v577 = vunpack.c.l.b16 %v534
        %v578 = vunpack.c.h.b16 %v534
        %v579 = vunpack.c.l.b16 %v535
        %v580 = vunpack.c.h.b16 %v535
        %v581 = vunpack.c.l.b16 %v536
        %v582 = vunpack.c.h.b16 %v536
        %v583 = vunpack.c.l.b16 %v537
        %v584 = vunpack.c.h.b16 %v537
        %v585 = vunpack.c.l.b16 %v538
        %v586 = vunpack.c.h.b16 %v538
        %v587 = vunpack.c.l.b16 %v539
        %v588 = vunpack.c.h.b16 %v539
        %v589 = vunpack.c.l.b16 %v540
        %v590 = vunpack.c.h.b16 %v540
        %v591 = vunpack.c.l.b16 %v541
        %v592 = vunpack.c.h.b16 %v541
        %v593 = vunpack.c.l.b16 %v542
        %v594 = vunpack.c.h.b16 %v542
        %v595 = vunpack.c.l.b16 %v543
        %v596 = vunpack.c.h.b16 %v543
        %v597 = vunpack.c.l.b16 %v544
        %v598 = vunpack.c.h.b16 %v544
        %v599 = vpack.c.b16 %v569, %v567
        %v600 = vpack.c.b16 %v570, %v568
        %v601 = vpack.c.b16 %v573, %v571
        %v602 = vpack.c.b16 %v574, %v572
        %v603 = vpack.c.b16 %v577, %v575
        %v604 = vpack.c.b16 %v578, %v576
        %v605 = vpack.c.b16 %v581, %v579
        %v606 = vpack.c.b16 %v582, %v580
        %v607 = vpack.c.b16 %v585, %v583
        %v608 = vpack.c.b16 %v586, %v584
        %v609 = vpack.c.b16 %v589, %v587
        %v610 = vpack.c.b16 %v590, %v588
        %v611 = vpack.c.b16 %v593, %v591
        %v612 = vpack.c.b16 %v594, %v592
        %v613 = vpack.c.b16 %v597, %v595
        %v614 = vpack.c.b16 %v598, %v596
        %631 = vmatpush.bf16.msra.mxu0 %v613
        %632 = vmatpush.bf16.msra.mxu0 %v611
        %633 = vmatpush.bf16.msra.mxu0 %v609
        %634 = vmatpush.bf16.msra.mxu0 %v607
        %635 = vmatpush.bf16.msra.mxu0 %v605
        %636 = vmatpush.bf16.msra.mxu0 %v603
        %637 = vmatpush.bf16.msra.mxu0 %v601
        %638 = vmatpush.bf16.msra.mxu0 %v599
        %639 = vmatmul.bf16.gmra.mxu0 %v528
        %v640 = vpop.f32.mrf.mxu0
        %v641 = vadd.f32 %v547, %v640
        %v642 = vpop.f32.mrf.mxu0
        %643 = vdwg.mxu0
        %644 = vmatpush.bf16.msra.mxu0 %v614
        %645 = vmatpush.bf16.msra.mxu0 %v612
        %646 = vmatpush.bf16.msra.mxu0 %v610
        %647 = vmatpush.bf16.msra.mxu0 %v608
        %648 = vmatpush.bf16.msra.mxu0 %v606
        %649 = vmatpush.bf16.msra.mxu0 %v604
        %650 = vmatpush.bf16.msra.mxu0 %v602
        %651 = vmatpush.bf16.msra.mxu0 %v600
        %652 = vmatmul.bf16.gmra.mxu0 %v528
        %v653 = vpop.f32.mrf.mxu0
        %v654 = vadd.f32 %v548, %v653
        %v655 = vpop.f32.mrf.mxu0
        %656 = vdwg.mxu0
        %v657 = vadd.f32 %v641, %v402
        %vm658 = vcmask 31744
        %659 = vst.msk [vmem:[%s391] sm:$0xff] %vm658, %v657
        %vm660 = vcmask 64512
        %661 = vst.msk [vmem:[%s399] sm:$0xff] %vm660, %v654
        %p662 = scmp.lt.s32.totalorder %s24, 1
        %s663 = scalar_select %p662, %s24, 1
        %p664 = scmp.lt.s32.totalorder %s25, 1
        %s665 = scalar_select %p664, %s25, 1
        %s666 = smul.addr %s663, 2
        %s667 = sadd.s32 %s665, %s666
        %s668 = smul.addr %s667, 8
        %s669 = scalar_lea.vmem %s6, %s668
        %p670 = scmp.lt.s32.totalorder %s24, 1
        %s671 = scalar_select %p670, %s24, 1
        %p672 = scmp.lt.s32.totalorder %s25, 1
        %s673 = scalar_select %p672, %s25, 1
        %s674 = smul.addr %s671, 2
        %s675 = sadd.s32 %s673, %s674
        %s676 = smul.addr %s675, 8
        %s677 = scalar_lea.vmem %s7, %s676
        // Predicated region
        $region57: #{tpu_custom_call.1} parent=43 // pred_check
          %p678 = pneg %p198
        $region58: #{tpu_custom_call.1} parent=43 // pred_check_branch
          %680 = sbr.rel (%p678) target = $region60
        $region59: #{tpu_custom_call.1} parent=43 // pred_region
          _
        $region60: #{tpu_custom_call.1} parent=43 // pred_fallthru
          _
        // Predicated region
        $region61: #{tpu_custom_call.1} parent=43 // pred_check
          %p681 = pneg %p226
        $region62: #{tpu_custom_call.1} parent=43 // pred_check_branch
          %683 = sbr.rel (%p681) target = $region64
        $region63: #{tpu_custom_call.1} parent=43 // pred_region
          _
        $region64: #{tpu_custom_call.1} parent=43 // pred_fallthru
          _
      $region44: #{tpu_custom_call.1} parent=5 // pred_fallthru
        _
      %p684 = scmp.le.s32.totalorder 2, %s15
      // Predicated region
      $region65: #{tpu_custom_call.1} parent=5 // pred_check
        %p685 = pneg %p684
      $region66: #{tpu_custom_call.1} parent=5 // pred_check_branch
        %687 = sbr.rel (%p685) target = $region68
      $region67: #{tpu_custom_call.1} parent=5 // pred_region
        %s688 = ssub.s32 %s15, 2
        // Predicated region
        $region69: #{tpu_custom_call.1} parent=67 // pred_check
          %p689 = pneg %p204
        $region70: #{tpu_custom_call.1} parent=67 // pred_check_branch
          %691 = sbr.rel (%p689) target = $region72
        $region71: #{tpu_custom_call.1} parent=67 // pred_region
          %p692 = scmp.lt.s32.totalorder %s26, 1
          %s693 = scalar_select %p692, %s26, 1
          %p694 = scmp.lt.s32.totalorder %s27, 1
          %s695 = scalar_select %p694, %s27, 1
          %s696 = smul.addr %s693, 2
          %s697 = sadd.s32 %s695, %s696
          %s698 = smul.addr %s697, 8
          %s699 = scalar_lea.vmem %s6, %s698
        $region72: #{tpu_custom_call.1} parent=67 // pred_fallthru
          _
        // Predicated region
        $region73: #{tpu_custom_call.1} parent=67 // pred_check
          %p700 = pneg %p232
        $region74: #{tpu_custom_call.1} parent=67 // pred_check_branch
          %702 = sbr.rel (%p700) target = $region76
        $region75: #{tpu_custom_call.1} parent=67 // pred_region
          %p703 = scmp.lt.s32.totalorder %s26, 1
          %s704 = scalar_select %p703, %s26, 1
          %p705 = scmp.lt.s32.totalorder %s27, 1
          %s706 = scalar_select %p705, %s27, 1
          %s707 = smul.addr %s704, 2
          %s708 = sadd.s32 %s706, %s707
          %s709 = smul.addr %s708, 8
          %s710 = scalar_lea.vmem %s7, %s709
        $region76: #{tpu_custom_call.1} parent=67 // pred_fallthru
          _
      $region68: #{tpu_custom_call.1} parent=5 // pred_fallthru
        _
    $region6: #{tpu_custom_call.1} parent=1 // loop_footer
      %s19 = sadd.s32 1, %s15
    $region7: #{tpu_custom_call.1} parent=1 // loop_footer_branch
      %14 = sbr.rel target = $region3
    $region8: #{tpu_custom_call.1} parent=1 // loop_exit
      _
    %711 = vsyncpa [#allocation4], 1
    %s712 = scalar_lea.sflag [#allocation4], 1
    %713 = vsyncpa %s712, 1

</llo_original>
